<compile_context>
chip_gen: v7x
topology: tpu7x:2x2x1
jax: 0.10.0
libtpu: 0.0.40
codegen_flags: <defaults>
</compile_context>

<pallas_src>
import functools

import jax
import jax.numpy as jnp
from jax import lax
from jax.experimental import pallas as pl
from jax.experimental.pallas import tpu as pltpu


# ----------------------------- Pallas kernel --------------------------------

def fused_conv_bn_relu_kernel(x_ref, w_ref, gb_ref, o_ref, sum_ref, sq_ref, *,
                              m_valid, tile_m, eps, add_relu):
    """Per grid step: lane-dense conv matmul for one pixel tile into the resident
    channel-major output + incremental BN sum/sumsq accumulation; last step:
    single-pass BN affine + ReLU over the resident output."""
    i = pl.program_id(0)

    # ---- conv as MXU matmul: (Cpad, Kdim_pad) @ (Kdim_pad, tile_m), bf16 in ----
    y = jnp.dot(w_ref[...], x_ref[...], preferred_element_type=jnp.float32)

    # Store this tile into the resident channel-major output (aligned lane slice).
    start = pl.multiple_of(i * tile_m, tile_m)
    o_ref[:, pl.ds(start, tile_m)] = y

    # ---- incremental BN batch statistics (pad columns are exactly zero) ----
    @pl.when(i == 0)
    def _():
        sum_ref[...] = jnp.zeros_like(sum_ref)
        sq_ref[...] = jnp.zeros_like(sq_ref)

    sum_ref[...] += jnp.sum(y, axis=1, keepdims=True)        # (Cpad, 1)
    sq_ref[...] += jnp.sum(y * y, axis=1, keepdims=True)     # (Cpad, 1)

    # ---- last step: finalize — one affine (+ReLU) pass over resident output ----
    @pl.when(i == pl.num_programs(0) - 1)
    def _():
        inv_m = 1.0 / m_valid
        mean = sum_ref[...] * inv_m                           # (Cpad, 1)
        var = sq_ref[...] * inv_m - mean * mean               # biased variance
        gamma = gb_ref[0]                                     # (Cpad, 1)
        beta = gb_ref[1]                                      # (Cpad, 1)
        scale = lax.rsqrt(var + eps) * gamma
        shift = beta - mean * scale
        out = o_ref[...] * scale + shift
        if add_relu:
            out = jnp.maximum(out, 0.0)
        o_ref[...] = out


# ------------------------------ JAX wrapper ----------------------------------

def lane_dense_im2col(x, K, padding):
    """x: (N, Cin, H, W) -> X_T (Cin*K*K, N*Ho*Wo), stride=1, dilation=1.
    Rows ordered (Cin, kh, kw) to match weight.reshape(Cout, Cin*K*K);
    columns ordered (N, Ho, Wo)."""
    N, Cin, H, W = x.shape
    Ho = H + 2 * padding - K + 1
    Wo = W + 2 * padding - K + 1
    x_pad = jnp.pad(x, ((0, 0), (0, 0), (padding, padding), (padding, padding)))
    cols = []
    for kh in range(K):
        for kw in range(K):
            cols.append(x_pad[:, :, kh:kh + Ho, kw:kw + Wo])  # (N, Cin, Ho, Wo)
    patches = jnp.stack(cols, axis=0).reshape(K, K, N, Cin, Ho, Wo)
    xt = patches.transpose(3, 0, 1, 2, 4, 5).reshape(Cin * K * K, N * Ho * Wo)
    return xt, (N, Ho, Wo)


def conv_bn_relu(x, weight, bias, gamma, beta, *, kernel_size=3, padding=1,
                 eps=1e-5, add_relu=True, max_tile_m=2048):
    """Forward of ConvBnRelu (training-mode BN batch statistics) on TPU.

    `bias` is accepted for interface parity with the PyTorch module but is
    intentionally unused: BatchNorm's batch-mean subtraction cancels the conv
    bias exactly in the forward output.
    """
    del bias
    N, Cin, H, W = x.shape
    Cout = weight.shape[0]
    K = kernel_size

    xt, (n, Ho, Wo) = lane_dense_im2col(x, K, padding)        # (Kdim, M), f32
    Kdim, M = xt.shape

    # Lane-dense tiling: pixels (M = N*Ho*Wo) on the 128-lane axis, output
    # channels on sublanes; contraction dim padded to a multiple of 8.
    tile_m = min(max_tile_m, pl.cdiv(M, 128) * 128)
    M_pad = pl.cdiv(M, tile_m) * tile_m
    grid_m = M_pad // tile_m
    Cpad = pl.cdiv(Cout, 8) * 8
    Kdim_pad = pl.cdiv(Kdim, 8) * 8

    # bf16 MXU feed (stats / affine / output stay f32).
    xt = jnp.pad(xt, ((0, Kdim_pad - Kdim), (0, M_pad - M))).astype(jnp.bfloat16)
    w2 = jnp.pad(weight.reshape(Cout, Kdim),
                 ((0, Cpad - Cout), (0, Kdim_pad - Kdim))).astype(jnp.bfloat16)
    gb = jnp.stack([
        jnp.pad(gamma, (0, Cpad - Cout), constant_values=1.0),
        jnp.pad(beta, (0, Cpad - Cout)),
    ]).reshape(2, Cpad, 1).astype(jnp.float32)

    # VMEM budget: resident f32 output + double-buffered bf16 X_T tiles + weights.
    resident_bytes = Cpad * M_pad * 4
    stream_bytes = 2 * Kdim_pad * tile_m * 2 + Cpad * Kdim_pad * 2
    vmem_limit = min(max(2 * (resident_bytes + stream_bytes) + (1 << 20),
                         16 * 1024 * 1024),
                     48 * 1024 * 1024)   # <= 48 MiB: safe on v7x (64 MiB VMEM)

    kernel = functools.partial(
        fused_conv_bn_relu_kernel,
        m_valid=M, tile_m=tile_m, eps=eps, add_relu=add_relu)

    out = pl.pallas_call(
        kernel,
        out_shape=jax.ShapeDtypeStruct((Cpad, M_pad), jnp.float32),
        grid_spec=pltpu.PrefetchScalarGridSpec(
            num_scalar_prefetch=0,
            grid=(grid_m,),
            in_specs=[
                pl.BlockSpec((Kdim_pad, tile_m), lambda i: (0, i)),   # X_T tile
                pl.BlockSpec((Cpad, Kdim_pad), lambda i: (0, 0)),     # weights
                pl.BlockSpec((2, Cpad, 1), lambda i: (0, 0, 0)),      # gamma/beta
            ],
            # Channel-major output resident in VMEM across the grid (doubles as
            # the BN-affine target); written back to HBM exactly once.
            out_specs=pl.BlockSpec((Cpad, M_pad), lambda i: (0, 0)),
            scratch_shapes=[pltpu.VMEM((Cpad, 1), jnp.float32),    # sum
                            pltpu.VMEM((Cpad, 1), jnp.float32)],   # sum of sq
        ),
        compiler_params=pltpu.CompilerParams(
            # Resident output + last-step finalize => sequential grid axis.
            dimension_semantics=("arbitrary",),
            vmem_limit_bytes=vmem_limit),
    )(xt, w2, gb)

    # Channel-major, lane-dense output: only slice + reshape + final NCHW axis
    # swap remain (the old internal (1,0,2) transpose is gone).
    out = out[:Cout, :M].reshape(Cout, n, Ho, Wo).transpose(1, 0, 2, 3)
    return out


# ------------------------------- reference -----------------------------------

def reference(x, weight, bias, gamma, beta, *, padding=1, eps=1e-5):
    y = lax.conv_general_dilated(
        x, weight, window_strides=(1, 1),
        padding=[(padding, padding), (padding, padding)],
        dimension_numbers=("NCHW", "OIHW", "NCHW"))
    y = y + bias.reshape(1, -1, 1, 1)   # cancelled by BN mean subtraction below
    mean = jnp.mean(y, axis=(0, 2, 3), keepdims=True)
    var = jnp.var(y, axis=(0, 2, 3), keepdims=True)          # biased
    y = (y - mean) / jnp.sqrt(var + eps)
    y = y * gamma.reshape(1, -1, 1, 1) + beta.reshape(1, -1, 1, 1)
    return jnp.maximum(y, 0.0)


# --------------------------------- main ---------------------------------------

if __name__ == "__main__":
    key = jax.random.PRNGKey(0)
    k_x, k_w, k_b, k_g, k_be = jax.random.split(key, 5)

    N, Cin, H, W = 2, 4, 16, 16
    Cout, K = 8, 3

    x = jax.random.normal(k_x, (N, Cin, H, W), dtype=jnp.float32)
    weight = jax.random.normal(k_w, (Cout, Cin, K, K), dtype=jnp.float32) * 0.1
    bias = jax.random.normal(k_b, (Cout,), dtype=jnp.float32) * 0.1
    gamma = jax.random.uniform(k_g, (Cout,), dtype=jnp.float32,
                               minval=0.5, maxval=1.5)
    beta = jax.random.normal(k_be, (Cout,), dtype=jnp.float32) * 0.1

    out = conv_bn_relu(x, weight, bias, gamma, beta,
                       kernel_size=K, padding=1)
    out = jax.block_until_ready(out)

    ref = reference(x, weight, bias, gamma, beta, padding=1)
    assert out.shape == (N, Cout, H, W)
    err = jnp.max(jnp.abs(out - ref))
    # bf16 MXU feed (per perf review) => tolerance relaxed vs the f32 reference.
    assert jnp.allclose(out, ref, atol=2e-2, rtol=2e-2), f"max err {err}"

    print("KERNEL_OK")
</pallas_src>

<mosaic_0001>
module attributes {stable_mosaic.version = 11 : i64} {
  func.func @fused_conv_bn_relu_kernel(%arg0: i32, %arg1: memref<40x512xbf16, #tpu.memory_space<vmem>>, %arg2: memref<8x40xbf16, #tpu.memory_space<vmem>>, %arg3: memref<2x8x1xf32, #tpu.memory_space<vmem>>, %arg4: memref<8x512xf32, #tpu.memory_space<vmem>>, %arg5: memref<8x1xf32, #tpu.memory_space<vmem>>, %arg6: memref<8x1xf32, #tpu.memory_space<vmem>>) attributes {dimension_semantics = [#tpu.dimension_semantics<arbitrary>], iteration_bounds = array<i64: 1>, scalar_prefetch = 0 : i64, scratch_operands = 2 : i64, tpu.core_type = #tpu.core_type<tc>, window_params = [{transform_indices = @transform_0, window_bounds = array<i64: 40, 512>}, {pipeline_mode = #tpu.pipeline_mode<synchronous>, transform_indices = @transform_1, window_bounds = array<i64: 8, 40>}, {pipeline_mode = #tpu.pipeline_mode<synchronous>, transform_indices = @transform_2, window_bounds = array<i64: 2, 8, 1>}, {pipeline_mode = #tpu.pipeline_mode<synchronous>, transform_indices = @transform_3, window_bounds = array<i64: 8, 512>}]} {
    %c0 = arith.constant 0 : index
    %c0_0 = arith.constant 0 : index
    %0 = vector.load %arg2[%c0, %c0_0] : memref<8x40xbf16, #tpu.memory_space<vmem>>, vector<8x40xbf16>
    %c0_1 = arith.constant 0 : index
    %c0_2 = arith.constant 0 : index
    %1 = vector.load %arg1[%c0_1, %c0_2] : memref<40x512xbf16, #tpu.memory_space<vmem>>, vector<40x512xbf16>
    %cst = arith.constant dense<0.000000e+00> : vector<8x512xf32>
    %2 = tpu.matmul %0, %1, %cst {dimension_numbers = #tpu.dot_dimension_numbers<[1], [0], [0], [1], [0, 0, 1, 1], [], []>} : vector<8x40xbf16>, vector<40x512xbf16>, vector<8x512xf32> -> vector<8x512xf32>
    %c512_i32 = arith.constant 512 : i32
    %3 = arith.muli %arg0, %c512_i32 : i32
    %4 = tpu.assume_multiple %3, 512 : i32
    %c0_3 = arith.constant 0 : index
    %5 = arith.index_cast %4 : i32 to index
    %6 = vector.load %arg4[%c0_3, %5] : memref<8x512xf32, #tpu.memory_space<vmem>>, vector<8x512xf32>
    tpu.vector_store %arg4[%c0_3, %5], %2 {strides = array<i32>} : memref<8x512xf32, #tpu.memory_space<vmem>>, vector<8x512xf32>,
    %c0_i32 = arith.constant 0 : i32
    %7 = arith.cmpi eq, %arg0, %c0_i32 : i32
    %8 = arith.extui %7 : i1 to i32
    %c0_i32_4 = arith.constant 0 : i32
    %9 = arith.cmpi ne, %8, %c0_i32_4 : i32
    scf.if %9 {
      %cst_17 = arith.constant 0.000000e+00 : f32
      %24 = vector.broadcast %cst_17 : f32 to vector<8x1xf32>
      %c0_18 = arith.constant 0 : index
      %c0_19 = arith.constant 0 : index
      %25 = vector.load %arg5[%c0_18, %c0_19] : memref<8x1xf32, #tpu.memory_space<vmem>>, vector<8x1xf32>
      tpu.vector_store %arg5[%c0_18, %c0_19], %24 {strides = array<i32>} : memref<8x1xf32, #tpu.memory_space<vmem>>, vector<8x1xf32>,
      %cst_20 = arith.constant 0.000000e+00 : f32
      %26 = vector.broadcast %cst_20 : f32 to vector<8x1xf32>
      %c0_21 = arith.constant 0 : index
      %c0_22 = arith.constant 0 : index
      %27 = vector.load %arg6[%c0_21, %c0_22] : memref<8x1xf32, #tpu.memory_space<vmem>>, vector<8x1xf32>
      tpu.vector_store %arg6[%c0_21, %c0_22], %26 {strides = array<i32>} : memref<8x1xf32, #tpu.memory_space<vmem>>, vector<8x1xf32>,
    } else {
    }
    %c0_5 = arith.constant 0 : index
    %c0_6 = arith.constant 0 : index
    %10 = vector.load %arg5[%c0_5, %c0_6] : memref<8x1xf32, #tpu.memory_space<vmem>>, vector<8x1xf32>
    %cst_7 = arith.constant dense<0.000000e+00> : vector<8xf32>
    %11 = vector.multi_reduction <add>, %2, %cst_7 [1] : vector<8x512xf32> to vector<8xf32>
    %12 = vector.shape_cast %11 : vector<8xf32> to vector<8x1xf32>
    %13 = arith.addf %10, %12 : vector<8x1xf32>
    %c0_8 = arith.constant 0 : index
    %c0_9 = arith.constant 0 : index
    %14 = vector.load %arg5[%c0_8, %c0_9] : memref<8x1xf32, #tpu.memory_space<vmem>>, vector<8x1xf32>
    tpu.vector_store %arg5[%c0_8, %c0_9], %13 {strides = array<i32>} : memref<8x1xf32, #tpu.memory_space<vmem>>, vector<8x1xf32>,
    %c0_10 = arith.constant 0 : index
    %c0_11 = arith.constant 0 : index
    %15 = vector.load %arg6[%c0_10, %c0_11] : memref<8x1xf32, #tpu.memory_space<vmem>>, vector<8x1xf32>
    %16 = arith.mulf %2, %2 : vector<8x512xf32>
    %cst_12 = arith.constant dense<0.000000e+00> : vector<8xf32>
    %17 = vector.multi_reduction <add>, %16, %cst_12 [1] : vector<8x512xf32> to vector<8xf32>
    %18 = vector.shape_cast %17 : vector<8xf32> to vector<8x1xf32>
    %19 = arith.addf %15, %18 : vector<8x1xf32>
    %c0_13 = arith.constant 0 : index
    %c0_14 = arith.constant 0 : index
    %20 = vector.load %arg6[%c0_13, %c0_14] : memref<8x1xf32, #tpu.memory_space<vmem>>, vector<8x1xf32>
    tpu.vector_store %arg6[%c0_13, %c0_14], %19 {strides = array<i32>} : memref<8x1xf32, #tpu.memory_space<vmem>>, vector<8x1xf32>,
    %c0_i32_15 = arith.constant 0 : i32
    %21 = arith.cmpi eq, %arg0, %c0_i32_15 : i32
    %22 = arith.extui %21 : i1 to i32
    %c0_i32_16 = arith.constant 0 : i32
    %23 = arith.cmpi ne, %22, %c0_i32_16 : i32
    scf.if %23 {
      %c0_17 = arith.constant 0 : index
      %c0_18 = arith.constant 0 : index
      %24 = vector.load %arg5[%c0_17, %c0_18] : memref<8x1xf32, #tpu.memory_space<vmem>>, vector<8x1xf32>
      %cst_19 = arith.constant 0.001953125 : f32
      %25 = vector.broadcast %cst_19 : f32 to vector<8x1xf32>
      %26 = arith.mulf %24, %25 : vector<8x1xf32>
      %c0_20 = arith.constant 0 : index
      %c0_21 = arith.constant 0 : index
      %27 = vector.load %arg6[%c0_20, %c0_21] : memref<8x1xf32, #tpu.memory_space<vmem>>, vector<8x1xf32>
      %cst_22 = arith.constant 0.001953125 : f32
      %28 = vector.broadcast %cst_22 : f32 to vector<8x1xf32>
      %29 = arith.mulf %27, %28 : vector<8x1xf32>
      %30 = arith.mulf %26, %26 : vector<8x1xf32>
      %31 = arith.subf %29, %30 : vector<8x1xf32>
      %c0_23 = arith.constant 0 : index
      %c0_24 = arith.constant 0 : index
      %c0_25 = arith.constant 0 : index
      %32 = vector.load %arg3[%c0_23, %c0_24, %c0_25] : memref<2x8x1xf32, #tpu.memory_space<vmem>>, vector<1x8x1xf32>
      %33 = vector.shape_cast %32 : vector<1x8x1xf32> to vector<8x1xf32>
      %c1 = arith.constant 1 : index
      %c0_26 = arith.constant 0 : index
      %c0_27 = arith.constant 0 : index
      %34 = vector.load %arg3[%c1, %c0_26, %c0_27] : memref<2x8x1xf32, #tpu.memory_space<vmem>>, vector<1x8x1xf32>
      %35 = vector.shape_cast %34 : vector<1x8x1xf32> to vector<8x1xf32>
      %cst_28 = arith.constant 9.99999974E-6 : f32
      %36 = vector.broadcast %cst_28 : f32 to vector<8x1xf32>
      %37 = arith.addf %31, %36 : vector<8x1xf32>
      %38 = math.rsqrt %37 : vector<8x1xf32>
      %39 = arith.mulf %38, %33 : vector<8x1xf32>
      %40 = arith.mulf %26, %39 : vector<8x1xf32>
      %41 = arith.subf %35, %40 : vector<8x1xf32>
      %c0_29 = arith.constant 0 : index
      %c0_30 = arith.constant 0 : index
      %42 = vector.load %arg4[%c0_29, %c0_30] : memref<8x512xf32, #tpu.memory_space<vmem>>, vector<8x512xf32>
      %43 = vector.broadcast %39 : vector<8x1xf32> to vector<8x512xf32>
      %44 = arith.mulf %42, %43 : vector<8x512xf32>
      %45 = vector.broadcast %41 : vector<8x1xf32> to vector<8x512xf32>
      %46 = arith.addf %44, %45 : vector<8x512xf32>
      %cst_31 = arith.constant 0.000000e+00 : f32
      %47 = vector.broadcast %cst_31 : f32 to vector<8x512xf32>
      %48 = arith.maximumf %46, %47 : vector<8x512xf32>
      %c0_32 = arith.constant 0 : index
      %c0_33 = arith.constant 0 : index
      %49 = vector.load %arg4[%c0_32, %c0_33] : memref<8x512xf32, #tpu.memory_space<vmem>>, vector<8x512xf32>
      tpu.vector_store %arg4[%c0_32, %c0_33], %48 {strides = array<i32>} : memref<8x512xf32, #tpu.memory_space<vmem>>, vector<8x512xf32>,
    } else {
    }
    return
  }
  func.func @transform_0(%arg0: i32) -> (i32, i32) {
    %c0_i32 = arith.constant 0 : i32
    %c0_i32_0 = arith.constant 0 : i32
    return %c0_i32, %arg0 : i32, i32
  }
  func.func @transform_1(%arg0: i32) -> (i32, i32) {
    %c0_i32 = arith.constant 0 : i32
    %c0_i32_0 = arith.constant 0 : i32
    %c0_i32_1 = arith.constant 0 : i32
    return %c0_i32, %c0_i32_0 : i32, i32
  }
  func.func @transform_2(%arg0: i32) -> (i32, i32, i32) {
    %c0_i32 = arith.constant 0 : i32
    %c0_i32_0 = arith.constant 0 : i32
    %c0_i32_1 = arith.constant 0 : i32
    %c0_i32_2 = arith.constant 0 : i32
    return %c0_i32, %c0_i32_0, %c0_i32_1 : i32, i32, i32
  }
  func.func @transform_3(%arg0: i32) -> (i32, i32) {
    %c0_i32 = arith.constant 0 : i32
    %c0_i32_0 = arith.constant 0 : i32
    %c0_i32_1 = arith.constant 0 : i32
    return %c0_i32, %c0_i32_0 : i32, i32
  }
}

</mosaic_0001>

<llo_original>
// kernel: tpu_custom_call.1
$region0: #{tpu_custom_call.1}
  #allocation0 [shape = 'u32[]', space=smem, size = 0x4, offset = 0x4, fixed_abs, tag = 'smem constant byte address 0x4 - core index']
  #allocation1 [shape = 'u32[144,128]{1,0:T(1,128)}', space=vmem, size = 0x12000, scoped, tag = 'internal scratch']
  #allocation2 [shape = 'f32[8,1]{1,0:T(8,128)}', space=vmem, size = 0x1000, scoped, tag = 'scratch operand']
  #allocation3 [shape = 'f32[8,1]{1,0:T(8,128)}', space=vmem, size = 0x1000, scoped, tag = 'scratch operand']
  %s0 = inlined_call_operand.hbm [shape: bf16[40,512], index: 0, kind: input, shape index: {}]
  %s1 = inlined_call_operand.vmem [shape: bf16[8,40], index: 1, kind: input, shape index: {}]
  %s2 = inlined_call_operand.vmem [shape: f32[2,8,1], index: 2, kind: input, shape index: {}]
  %s3 = inlined_call_operand.hbm [shape: f32[8,512], index: 3, kind: output, shape index: {}]
  %s4 = sld [smem:[#allocation0]]
  $region34: #{tpu_custom_call.1} parent=0
    _
  %s6 = ssub.s32 1, %s4
  %s7 = scalar_select 0, %s6, %s4
  $region1: #{tpu_custom_call.1} parent=0
    #allocation4 [shape = 'u8[40960]{0}', space=vmem, size = 0xa000, scoped, tag = 'input window, operand 0, single buffered']
    #allocation5 [shape = 's32[1]{0}', space=sflag, size = 0x4, scoped, tag = 'scoped memory for tpu_custom_call.1']
    #allocation6 [shape = 's32[1]{0}', space=sflag, size = 0x4, scoped, tag = 'scoped memory for tpu_custom_call.1']
    #allocation7 [shape = 'u8[16384]{0}', space=vmem, size = 0x4000, scoped, tag = 'output window, operand 0, single buffered']
    %8 = vsyncpa [#allocation5], 0
    %9 = vsyncpa [#allocation6], 0
    // Predicated region
    $region2: #{tpu_custom_call.1} parent=1 // pred_check
      _
    $region3: #{tpu_custom_call.1} parent=1 // pred_check_branch
      %11 = sbr.rel (0) target = $region5
    $region4: #{tpu_custom_call.1} parent=1 // pred_region
      %s13 = ssub.s32 1280, 1280
      %14 = vsyncadd [#allocation5], %s13
      %s15 = sshll.u32 [#allocation4], 4
      %s16 = int_to_ptr.vmem [resolvable:$true] %s15
      %21 = dma.hbm_to_vmem [thread:$0]  %s0, 1280, %s16, [#allocation5], 256, 256, 16
    $region5: #{tpu_custom_call.1} parent=1 // pred_fallthru
      _
    // Predicated region
    $region6: #{tpu_custom_call.1} parent=1 // pred_check
      _
    $region7: #{tpu_custom_call.1} parent=1 // pred_check_branch
      %23 = sbr.rel (0) target = $region9
    $region8: #{tpu_custom_call.1} parent=1 // pred_region
      _
    $region9: #{tpu_custom_call.1} parent=1 // pred_fallthru
      _
    // Predicated region
    $region10: #{tpu_custom_call.1} parent=1 // pred_check
      _
    $region11: #{tpu_custom_call.1} parent=1 // pred_check_branch
      %25 = sbr.rel (0) target = $region13
    $region12: #{tpu_custom_call.1} parent=1 // pred_region
      _
    $region13: #{tpu_custom_call.1} parent=1 // pred_fallthru
      _
    // Predicated region
    $region14: #{tpu_custom_call.1} parent=1 // pred_check
      _
    $region15: #{tpu_custom_call.1} parent=1 // pred_check_branch
      %27 = sbr.rel (0) target = $region17
    $region16: #{tpu_custom_call.1} parent=1 // pred_region
      %28 = dma.done [#allocation5], 1280
    $region17: #{tpu_custom_call.1} parent=1 // pred_fallthru
      _
    %v30 = vld [vmem:[%s1] sm:$0xf]
    %v31 = vld [vmem:[#allocation4] sm:$0xff]
    %v32 = vld [vmem:[#allocation4 + $0x8] sm:$0xff]
    %v33 = vld [vmem:[#allocation4 + $0x10] sm:$0xff]
    %v34 = vld [vmem:[#allocation4 + $0x18] sm:$0xff]
    %v35 = vld [vmem:[#allocation4 + $0x20] sm:$0xff]
    %v36 = vld [vmem:[#allocation4 + $0x28] sm:$0xff]
    %v37 = vld [vmem:[#allocation4 + $0x30] sm:$0xff]
    %v38 = vld [vmem:[#allocation4 + $0x38] sm:$0xff]
    %v39 = vld [vmem:[#allocation4 + $0x40] sm:$0xff]
    %v40 = vld [vmem:[#allocation4 + $0x48] sm:$0xff]
    %v51 = vunpack.c.l.b16 %v31
    %v52 = vunpack.c.h.b16 %v31
    %v53 = vunpack.c.l.b16 %v32
    %v54 = vunpack.c.h.b16 %v32
    %v55 = vunpack.c.l.b16 %v33
    %v56 = vunpack.c.h.b16 %v33
    %v57 = vunpack.c.l.b16 %v34
    %v58 = vunpack.c.h.b16 %v34
    %v59 = vunpack.c.l.b16 %v35
    %v60 = vunpack.c.h.b16 %v35
    %v61 = vunpack.c.l.b16 %v36
    %v62 = vunpack.c.h.b16 %v36
    %v63 = vunpack.c.l.b16 %v37
    %v64 = vunpack.c.h.b16 %v37
    %v65 = vunpack.c.l.b16 %v38
    %v66 = vunpack.c.h.b16 %v38
    %v67 = vunpack.c.l.b16 %v39
    %v68 = vunpack.c.h.b16 %v39
    %v69 = vunpack.c.l.b16 %v40
    %v70 = vunpack.c.h.b16 %v40
    %v71 = vpack.c.b16 %v55, %v51
    %v72 = vpack.c.b16 %v56, %v52
    %v73 = vpack.c.b16 %v57, %v53
    %v74 = vpack.c.b16 %v58, %v54
    %v75 = vpack.c.b16 %v63, %v59
    %v76 = vpack.c.b16 %v64, %v60
    %v77 = vpack.c.b16 %v65, %v61
    %v78 = vpack.c.b16 %v66, %v62
    %v79 = vpack.c.b16 %v67, %v67
    %v80 = vpack.c.b16 %v68, %v68
    %v81 = vpack.c.b16 %v69, %v69
    %v82 = vpack.c.b16 %v70, %v70
    %vm91 = vcmask 326656
    %v93 = vsel %vm91, %v30, 0
    %vm95 = vcmask 1043456
    %v97 = vsel %vm95, %v79, 0
    %v100 = vsel %vm95, %v80, 0
    %v103 = vsel %vm95, %v81, 0
    %v106 = vsel %vm95, %v82, 0
    %108 = vmatprep.subr.bf16.mxu0 %v72
    %109 = vmatpush1.bf16.msra.mxu0 %v71
    %110 = vmatprep.subr.bf16.mxu0 %v76
    %111 = vmatpush1.bf16.msra.mxu0 %v75
    %112 = vmatprep.subr.bf16.mxu0 %v100
    %113 = vmatpush1.bf16.msra.mxu0 %v97
    %114 = vmatprep.subr.bf16.mxu0 0
    %115 = vmatpush1.bf16.msra.mxu0 0
    %116 = vmatprep.subr.bf16.mxu0 0
    %117 = vmatpush1.bf16.msra.mxu0 0
    %118 = vmatprep.subr.bf16.mxu0 0
    %119 = vmatpush1.bf16.msra.mxu0 0
    %120 = vmatprep.subr.bf16.mxu0 0
    %121 = vmatpush1.bf16.msra.mxu0 0
    %122 = vmatprep.subr.bf16.mxu0 0
    %123 = vmatpush1.bf16.msra.mxu0 0
    %124 = vmatprep.subr.bf16.mxu0 0
    %125 = vmatpush1.bf16.msra.mxu0 0
    %126 = vmatprep.subr.bf16.mxu0 0
    %127 = vmatpush1.bf16.msra.mxu0 0
    %128 = vmatprep.subr.bf16.mxu0 0
    %129 = vmatpush1.bf16.msra.mxu0 0
    %130 = vmatprep.subr.bf16.mxu0 0
    %131 = vmatpush1.bf16.msra.mxu0 0
    %132 = vmatprep.subr.bf16.mxu0 0
    %133 = vmatpush1.bf16.msra.mxu0 0
    %134 = vmatprep.subr.bf16.mxu0 0
    %135 = vmatpush1.bf16.msra.mxu0 0
    %136 = vmatprep.subr.bf16.mxu0 0
    %137 = vmatpush1.bf16.msra.mxu0 0
    %138 = vmatprep.subr.bf16.mxu0 0
    %139 = vmatpush1.bf16.msra.mxu0 0
    %140 = vmatprep.mubr.bf16.mxu0 0
    %141 = vmatmul.mubr.bf16.gmra.mrb[0].mxu0 %v93
    %v142 = vpop.f32.mrb[0].mxu0
    %v143 = vadd.f32 0.0, %v142
    %v144 = vpop.f32.mrb[0].mxu0
    %v145 = vadd.f32 0.0, %v144
    %v146 = vpop.f32.mrb[0].mxu0
    %v147 = vpop.f32.mrb[0].mxu0
    %148 = vdwg.mxu0
    %149 = vmatprep.subr.bf16.mxu0 %v74
    %150 = vmatpush1.bf16.msra.mxu0 %v73
    %151 = vmatprep.subr.bf16.mxu0 %v78
    %152 = vmatpush1.bf16.msra.mxu0 %v77
    %153 = vmatprep.subr.bf16.mxu0 %v106
    %154 = vmatpush1.bf16.msra.mxu0 %v103
    %155 = vmatprep.subr.bf16.mxu0 0
    %156 = vmatpush1.bf16.msra.mxu0 0
    %157 = vmatprep.subr.bf16.mxu0 0
    %158 = vmatpush1.bf16.msra.mxu0 0
    %159 = vmatprep.subr.bf16.mxu0 0
    %160 = vmatpush1.bf16.msra.mxu0 0
    %161 = vmatprep.subr.bf16.mxu0 0
    %162 = vmatpush1.bf16.msra.mxu0 0
    %163 = vmatprep.subr.bf16.mxu0 0
    %164 = vmatpush1.bf16.msra.mxu0 0
    %165 = vmatprep.subr.bf16.mxu0 0
    %166 = vmatpush1.bf16.msra.mxu0 0
    %167 = vmatprep.subr.bf16.mxu0 0
    %168 = vmatpush1.bf16.msra.mxu0 0
    %169 = vmatprep.subr.bf16.mxu0 0
    %170 = vmatpush1.bf16.msra.mxu0 0
    %171 = vmatprep.subr.bf16.mxu0 0
    %172 = vmatpush1.bf16.msra.mxu0 0
    %173 = vmatprep.subr.bf16.mxu0 0
    %174 = vmatpush1.bf16.msra.mxu0 0
    %175 = vmatprep.subr.bf16.mxu0 0
    %176 = vmatpush1.bf16.msra.mxu0 0
    %177 = vmatprep.subr.bf16.mxu0 0
    %178 = vmatpush1.bf16.msra.mxu0 0
    %179 = vmatprep.subr.bf16.mxu0 0
    %180 = vmatpush1.bf16.msra.mxu0 0
    %181 = vmatprep.mubr.bf16.mxu0 0
    %182 = vmatmul.mubr.bf16.gmra.mrb[0].mxu0 %v93
    %v183 = vpop.f32.mrb[0].mxu0
    %v184 = vadd.f32 0.0, %v183
    %v185 = vpop.f32.mrb[0].mxu0
    %v186 = vadd.f32 0.0, %v185
    %v187 = vpop.f32.mrb[0].mxu0
    %v188 = vpop.f32.mrb[0].mxu0
    %189 = vdwg.mxu0
    %s190 = smul.u32 0, 512
    %s191 = sshra.s32 %s190, 7
    %s192 = sand.u32 %s190, 127
    %s193 = smul.addr %s191, 8
    %s194 = scalar_lea.vmem [#allocation7], %s193
    %195 = vst [vmem:[%s194] sm:$0xff] %v143
    %196 = vst [vmem:[%s194 + $0x8] sm:$0xff] %v145
    %197 = vst [vmem:[%s194 + $0x10] sm:$0xff] %v184
    %198 = vst [vmem:[%s194 + $0x18] sm:$0xff] %v186
    %p199 = scmp.eq.s32.totalorder 0, 0
    // Predicated region
    $region18: #{tpu_custom_call.1} parent=1 // pred_check
      %p200 = pneg %p199
    $region19: #{tpu_custom_call.1} parent=1 // pred_check_branch
      %202 = sbr.rel (%p200) target = $region21
    $region20: #{tpu_custom_call.1} parent=1 // pred_region
      %vm203 = vcmask 7168
      %204 = vst.msk [vmem:[#allocation2] sm:$0xff] %vm203, 0.0
      %205 = vst.msk [vmem:[#allocation3] sm:$0xff] %vm203, 0.0
    $region21: #{tpu_custom_call.1} parent=1 // pred_fallthru
      _
    %v206 = vld [vmem:[#allocation2] sm:$0xff]
    %v207 = vadd.f32 %v143, %v145
    %v208 = vadd.f32 %v207, %v184
    %v209 = vadd.f32 %v208, %v186
    %210 = vadd.xlane.f32.xlu0 %v209
    %v211 = vpop.xlane.xlu0 %210
    %v212 = vadd.f32 %v206, %v211
    %vm213 = vcmask 7168
    %214 = vst.msk [vmem:[#allocation2] sm:$0xff] %vm213, %v212
    %v215 = vld [vmem:[#allocation3] sm:$0xff]
    %v216 = vmul.f32 %v143, %v143
    %v217 = vmul.f32 %v145, %v145
    %v218 = vmul.f32 %v184, %v184
    %v219 = vmul.f32 %v186, %v186
    %v220 = vadd.f32 %v216, %v217
    %v221 = vadd.f32 %v220, %v218
    %v222 = vadd.f32 %v221, %v219
    %223 = vadd.xlane.f32.xlu0 %v222
    %v224 = vpop.xlane.xlu0 %223
    %v225 = vadd.f32 %v215, %v224
    %226 = vst.msk [vmem:[#allocation3] sm:$0xff] %vm213, %v225
    // Predicated region
    $region22: #{tpu_custom_call.1} parent=1 // pred_check
      %p227 = pneg %p199
    $region23: #{tpu_custom_call.1} parent=1 // pred_check_branch
      %229 = sbr.rel (%p227) target = $region25
    $region24: #{tpu_custom_call.1} parent=1 // pred_region
      %v230 = vld [vmem:[#allocation2] sm:$0xff]
      %v231 = vmul.f32 %v230, 0.001953125
      %v232 = vld [vmem:[#allocation3] sm:$0xff]
      %v233 = vmul.f32 %v232, 0.001953125
      %v234 = vmul.f32 %v231, %v231
      %v235 = vsub.f32 %v233, %v234
      %v236 = vld [vmem:[%s2] sm:$0xff]
      %s237 = scalar_lea.vmem %s2, 8
      %v238 = vld [vmem:[%s237] sm:$0xff]
      %v239 = vadd.f32 %v235, 1e-05
      %v240 = vrsqrt.pop %v239
      %v241 = vmul.f32 %v240, %v236
      %v242 = vmul.f32 %v231, %v241
      %v243 = vsub.f32 %v238, %v242
      %v244 = vld [vmem:[#allocation7] sm:$0xff]
      %v245 = vld [vmem:[#allocation7 + $0x8] sm:$0xff]
      %v246 = vld [vmem:[#allocation7 + $0x10] sm:$0xff]
      %v247 = vld [vmem:[#allocation7 + $0x18] sm:$0xff]
      %249 = vset.pattern.permute.xlu0 0
      %250 = vperm.xlu0 %249, %v241
      %v251 = vpop.permute.xlu0 %250
      %v253 = vmul.f32 %v244, %v251
      %v254 = vmul.f32 %v245, %v251
      %v255 = vmul.f32 %v246, %v251
      %v256 = vmul.f32 %v247, %v251
      %258 = vset.pattern.permute.xlu0 0
      %259 = vperm.xlu0 %258, %v243
      %v260 = vpop.permute.xlu0 %259
      %v262 = vadd.f32 %v253, %v260
      %v263 = vadd.f32 %v254, %v260
      %v264 = vadd.f32 %v255, %v260
      %v265 = vadd.f32 %v256, %v260
      %v266 = vmax.f32 %v262, 0.0
      %v267 = vmax.f32 %v263, 0.0
      %v268 = vmax.f32 %v264, 0.0
      %v269 = vmax.f32 %v265, 0.0
      %270 = vst [vmem:[#allocation7] sm:$0xff] %v266
      %271 = vst [vmem:[#allocation7 + $0x8] sm:$0xff] %v267
      %272 = vst [vmem:[#allocation7 + $0x10] sm:$0xff] %v268
      %273 = vst [vmem:[#allocation7 + $0x18] sm:$0xff] %v269
    $region25: #{tpu_custom_call.1} parent=1 // pred_fallthru
      _
    // Predicated region
    $region26: #{tpu_custom_call.1} parent=1 // pred_check
      _
    $region27: #{tpu_custom_call.1} parent=1 // pred_check_branch
      %275 = sbr.rel (0) target = $region29
    $region28: #{tpu_custom_call.1} parent=1 // pred_region
      %s277 = ssub.s32 512, 512
      %278 = vsyncadd [#allocation6], %s277
      %s280 = sshll.u32 [#allocation7], 4
      %s281 = int_to_ptr.vmem [resolvable:$true] %s280
      %283 = dma.vmem_to_hbm [thread:$0]  %s281, 512, %s3, [#allocation6]
    $region29: #{tpu_custom_call.1} parent=1 // pred_fallthru
      _
    // Predicated region
    $region30: #{tpu_custom_call.1} parent=1 // pred_check
      _
    $region31: #{tpu_custom_call.1} parent=1 // pred_check_branch
      %285 = sbr.rel (0) target = $region33
    $region32: #{tpu_custom_call.1} parent=1 // pred_region
      %286 = dma.done [#allocation6], 512
    $region33: #{tpu_custom_call.1} parent=1 // pred_fallthru
      _
    %287 = vsyncpa [#allocation5], 1
    %288 = vsyncpa [#allocation6], 1

</llo_original>
